<compile_context>
chip_gen: v5e
topology: v5e:2x2
jax: 0.10.0
libtpu: 0.0.40
codegen_flags: <defaults>
</compile_context>

<pallas_src>
import functools

import jax
import jax.numpy as jnp
from jax.experimental import pallas as pl
from jax.experimental.pallas import tpu as pltpu


N_LANDMARKS = 40
INPUT_DIM = N_LANDMARKS * 2      # 80
LATENT_DIM = 8
NEG_SLOPE = 0.2

TB_MAX = 2048                    # default batch-tile rows; sweep 1024/2048/4096.
                                 # Kept <= 2048 so double-buffered I/O + intermediates
                                 # stay far under v7x's 32 MiB scoped-VMEM default.


def _leaky_relu(x, slope=NEG_SLOPE):
    return jnp.where(x > 0, x, slope * x)


def _round_up(a, m):
    return ((a + m - 1) // m) * m


def _cdiv(a, b):
    return -(-a // b)


def _choose_tiling(batch, tb_max):
    """Pick (tb, n_tiles, bp) with bounded padding and >=2 tiles for megacore."""
    n_tiles = _cdiv(batch, tb_max)
    if batch >= 16:
        # Guarantee >= 2 grid steps so ("parallel",) shards the batch axis
        # across the two TensorCores on v7x (each tile still >= 8 rows).
        n_tiles = max(n_tiles, 2)
    tb = _round_up(_cdiv(batch, n_tiles), 8)
    n_tiles = _cdiv(batch, tb)          # re-derive: rounding may drop a tile
    bp = n_tiles * tb                   # padding bounded by < tb rows total
    return tb, n_tiles, bp


# ---------------------------------------------------------------------------
# Kernel
# ---------------------------------------------------------------------------
def _autoencoder_kernel(
    x_ref,                               # (tb, 80)  f32
    w1_ref, b1_ref,                      # (80, 64), (1, 64)   encoder L1
    w2_ref, b2_ref,                      # (64, 32), (1, 32)   encoder L2
    wf_ref, bf_ref,                      # (32, 32), (1, 32)   fused enc L3 + dec L1
    w4_ref, b4_ref,                      # (32, 64), (1, 64)   decoder L2
    w5_ref, b5_ref,                      # (64, 80), (1, 80)   decoder L3
    out_ref,                             # (tb, 80)  f32
):
    cdtype = w1_ref.dtype                # MXU operand dtype (f32 or bf16)

    def layer(h, w_ref, b_ref, activate=True):
        # bf16 path: operands bf16, accumulation + bias + activation in f32.
        y = jnp.dot(h.astype(cdtype), w_ref[...],
                    preferred_element_type=jnp.float32) + b_ref[...]
        return _leaky_relu(y) if activate else y

    h = layer(x_ref[...], w1_ref, b1_ref)            # (tb, 64)
    h = layer(h, w2_ref, b2_ref)                     # (tb, 32)
    h = layer(h, wf_ref, bf_ref)                     # (tb, 32)  fused latent step
    h = layer(h, w4_ref, b4_ref)                     # (tb, 64)
    y = layer(h, w5_ref, b5_ref, activate=False)     # (tb, 80)

    out_ref[...] = y.astype(out_ref.dtype)


# ---------------------------------------------------------------------------
# Parameter preparation (run ONCE when params are created / updated)
# ---------------------------------------------------------------------------
def prepare_kernel_params(params, compute_dtype=jnp.float32):
    """Fuse / reshape raw (in, out)-layout params for the kernel.

    compute_dtype=jnp.bfloat16 stores the matmul operands in bf16 (MXU lever on
    v6e/v7x); biases and accumulation always stay float32.
    """
    cd = compute_dtype

    w1 = params["ew1"].astype(cd)                                        # (80, 64)
    b1 = params["eb1"].reshape(1, -1)                                    # (1, 64)

    w2 = params["ew2"].astype(cd)                                        # (64, 32)
    b2 = params["eb2"].reshape(1, -1)                                    # (1, 32)

    # Fuse encoder L3 (32->8, no activation) with decoder L1 (8->32), in f32.
    wf = (params["ew3"] @ params["dw1"]).astype(cd)                      # (32, 32)
    bf = (params["eb3"] @ params["dw1"] + params["db1"]).reshape(1, -1)  # (1, 32)

    w4 = params["dw2"].astype(cd)                                        # (32, 64)
    b4 = params["db2"].reshape(1, -1)                                    # (1, 64)

    w5 = params["dw3"].astype(cd)                                        # (64, 80)
    b5 = params["db3"].reshape(1, -1)                                    # (1, 80)

    return (w1, b1, w2, b2, wf, bf, w4, b4, w5, b5)


# ---------------------------------------------------------------------------
# Forward
# ---------------------------------------------------------------------------
@functools.partial(jax.jit, static_argnames=("tb_max",))
def tooth_autoencoder_forward(x, kernel_params, tb_max=TB_MAX):
    """x: (B, INPUT_DIM) float32. kernel_params: output of prepare_kernel_params."""
    batch = x.shape[0]
    tb, n_tiles, bp = _choose_tiling(batch, tb_max)

    # Batch padding only when needed (bounded to < tb rows); no feature padding.
    xk = x if bp == batch else jnp.pad(x, ((0, bp - batch), (0, 0)))

    x_spec = pl.BlockSpec((tb, INPUT_DIM), lambda i: (i, 0))
    out_spec = pl.BlockSpec((tb, INPUT_DIM), lambda i: (i, 0))
    # Constant index_map: each weight/bias block is DMA'd once and stays
    # resident in VMEM across all grid steps (no per-step re-copy).
    param_specs = [pl.BlockSpec(p.shape, lambda i: (0, 0)) for p in kernel_params]

    out = pl.pallas_call(
        _autoencoder_kernel,
        out_shape=jax.ShapeDtypeStruct((bp, INPUT_DIM), jnp.float32),
        grid=(n_tiles,),
        in_specs=[x_spec] + param_specs,
        out_specs=out_spec,
        compiler_params=pltpu.CompilerParams(
            dimension_semantics=("parallel",)),
    )(xk, *kernel_params)

    # Keep the row slice so padded garbage rows never escape.
    return out if bp == batch else out[:batch]


# ---------------------------------------------------------------------------
# Init + pure-JAX reference (unfused, f32) of the original PyTorch math
# ---------------------------------------------------------------------------
def init_params(key):
    """Deterministic parameter init (PyTorch-Linear-style uniform bounds)."""
    dims = [
        ("e", 1, INPUT_DIM, 64),
        ("e", 2, 64, 32),
        ("e", 3, 32, LATENT_DIM),
        ("d", 1, LATENT_DIM, 32),
        ("d", 2, 32, 64),
        ("d", 3, 64, INPUT_DIM),
    ]
    params = {}
    for (tag, idx, fan_in, fan_out) in dims:
        key, kw, kb = jax.random.split(key, 3)
        bound = 1.0 / jnp.sqrt(fan_in)
        # stored as (in, out) so the kernel computes x @ W + b
        params[f"{tag}w{idx}"] = jax.random.uniform(
            kw, (fan_in, fan_out), jnp.float32, -bound, bound)
        params[f"{tag}b{idx}"] = jax.random.uniform(
            kb, (fan_out,), jnp.float32, -bound, bound)
    return params


def reference_forward(x, params):
    h = _leaky_relu(x @ params["ew1"] + params["eb1"])
    h = _leaky_relu(h @ params["ew2"] + params["eb2"])
    z = h @ params["ew3"] + params["eb3"]
    h = _leaky_relu(z @ params["dw1"] + params["db1"])
    h = _leaky_relu(h @ params["dw2"] + params["db2"])
    return h @ params["dw3"] + params["db3"]


# TODO(synk): encode()/decode()/generate_tooth()/interpolate_teeth() helper
# methods are not separate kernels; only forward() is implemented here.

if __name__ == "__main__":
    key = jax.random.PRNGKey(0)
    kparams_key, kx = jax.random.split(key)

    params = init_params(kparams_key)
    kernel_params = prepare_kernel_params(params)            # hoisted: done once

    # Small batch (single tile, partial block handled via bounded row padding).
    batch = 4
    x = jax.random.normal(kx, (batch, INPUT_DIM), jnp.float32)
    out = jax.block_until_ready(tooth_autoencoder_forward(x, kernel_params))
    ref = reference_forward(x, params)
    assert out.shape == (batch, INPUT_DIM)
    assert jnp.allclose(out, ref, atol=1e-4, rtol=1e-4), "mismatch vs reference"

    # Multi-tile path with a ragged last tile (B not a multiple of the tile).
    batch2 = 37
    x2 = jax.random.normal(jax.random.PRNGKey(1), (batch2, INPUT_DIM), jnp.float32)
    out2 = jax.block_until_ready(
        tooth_autoencoder_forward(x2, kernel_params, tb_max=16))
    ref2 = reference_forward(x2, params)
    assert out2.shape == (batch2, INPUT_DIM)
    assert jnp.allclose(out2, ref2, atol=1e-4, rtol=1e-4), "mismatch (tiled)"

    # bf16 MXU-operand path (f32 I/O, f32 accumulation): looser tolerance.
    kernel_params_bf16 = prepare_kernel_params(params, compute_dtype=jnp.bfloat16)
    out3 = jax.block_until_ready(tooth_autoencoder_forward(x2, kernel_params_bf16))
    assert out3.shape == (batch2, INPUT_DIM)
    assert jnp.allclose(out3, ref2, atol=5e-2, rtol=5e-2), "mismatch (bf16)"

    print("KERNEL_OK")
</pallas_src>

<mosaic_0001>
module attributes {stable_mosaic.version = 11 : i64} {
  func.func @_autoencoder_kernel(%arg0: i32, %arg1: memref<8x80xf32, #tpu.memory_space<vmem>>, %arg2: memref<80x64xf32, #tpu.memory_space<vmem>>, %arg3: memref<1x64xf32, #tpu.memory_space<vmem>>, %arg4: memref<64x32xf32, #tpu.memory_space<vmem>>, %arg5: memref<1x32xf32, #tpu.memory_space<vmem>>, %arg6: memref<32x32xf32, #tpu.memory_space<vmem>>, %arg7: memref<1x32xf32, #tpu.memory_space<vmem>>, %arg8: memref<32x64xf32, #tpu.memory_space<vmem>>, %arg9: memref<1x64xf32, #tpu.memory_space<vmem>>, %arg10: memref<64x80xf32, #tpu.memory_space<vmem>>, %arg11: memref<1x80xf32, #tpu.memory_space<vmem>>, %arg12: memref<8x80xf32, #tpu.memory_space<vmem>>) attributes {dimension_semantics = [#tpu.dimension_semantics<parallel>], iteration_bounds = array<i64: 1>, scalar_prefetch = 0 : i64, scratch_operands = 0 : i64, tpu.core_type = #tpu.core_type<tc>, window_params = [{transform_indices = @transform_0, window_bounds = array<i64: 8, 80>}, {pipeline_mode = #tpu.pipeline_mode<synchronous>, transform_indices = @transform_1, window_bounds = array<i64: 80, 64>}, {pipeline_mode = #tpu.pipeline_mode<synchronous>, transform_indices = @transform_2, window_bounds = array<i64: 1, 64>}, {pipeline_mode = #tpu.pipeline_mode<synchronous>, transform_indices = @transform_3, window_bounds = array<i64: 64, 32>}, {pipeline_mode = #tpu.pipeline_mode<synchronous>, transform_indices = @transform_4, window_bounds = array<i64: 1, 32>}, {pipeline_mode = #tpu.pipeline_mode<synchronous>, transform_indices = @transform_5, window_bounds = array<i64: 32, 32>}, {pipeline_mode = #tpu.pipeline_mode<synchronous>, transform_indices = @transform_6, window_bounds = array<i64: 1, 32>}, {pipeline_mode = #tpu.pipeline_mode<synchronous>, transform_indices = @transform_7, window_bounds = array<i64: 32, 64>}, {pipeline_mode = #tpu.pipeline_mode<synchronous>, transform_indices = @transform_8, window_bounds = array<i64: 1, 64>}, {pipeline_mode = #tpu.pipeline_mode<synchronous>, transform_indices = @transform_9, window_bounds = array<i64: 64, 80>}, {pipeline_mode = #tpu.pipeline_mode<synchronous>, transform_indices = @transform_10, window_bounds = array<i64: 1, 80>}, {transform_indices = @transform_11, window_bounds = array<i64: 8, 80>}]} {
    %c0 = arith.constant 0 : index
    %c0_0 = arith.constant 0 : index
    %0 = vector.load %arg1[%c0, %c0_0] : memref<8x80xf32, #tpu.memory_space<vmem>>, vector<8x80xf32>
    %c0_1 = arith.constant 0 : index
    %c0_2 = arith.constant 0 : index
    %1 = vector.load %arg2[%c0_1, %c0_2] : memref<80x64xf32, #tpu.memory_space<vmem>>, vector<80x64xf32>
    %cst = arith.constant dense<0.000000e+00> : vector<8x64xf32>
    %2 = tpu.matmul %0, %1, %cst {dimension_numbers = #tpu.dot_dimension_numbers<[1], [0], [0], [1], [0, 0, 1, 1], [], []>} : vector<8x80xf32>, vector<80x64xf32>, vector<8x64xf32> -> vector<8x64xf32>
    %c0_3 = arith.constant 0 : index
    %c0_4 = arith.constant 0 : index
    %3 = vector.load %arg3[%c0_3, %c0_4] : memref<1x64xf32, #tpu.memory_space<vmem>>, vector<1x64xf32>
    %4 = vector.broadcast %3 : vector<1x64xf32> to vector<8x64xf32>
    %5 = arith.addf %2, %4 : vector<8x64xf32>
    %cst_5 = arith.constant 0.000000e+00 : f32
    %6 = vector.broadcast %cst_5 : f32 to vector<8x64xf32>
    %7 = arith.cmpf ogt, %5, %6 : vector<8x64xf32>
    %cst_6 = arith.constant 2.000000e-01 : f32
    %8 = vector.broadcast %cst_6 : f32 to vector<8x64xf32>
    %9 = arith.mulf %8, %5 : vector<8x64xf32>
    %10 = arith.select %7, %5, %9 : vector<8x64xi1>, vector<8x64xf32>
    %c0_7 = arith.constant 0 : index
    %c0_8 = arith.constant 0 : index
    %11 = vector.load %arg4[%c0_7, %c0_8] : memref<64x32xf32, #tpu.memory_space<vmem>>, vector<64x32xf32>
    %cst_9 = arith.constant dense<0.000000e+00> : vector<8x32xf32>
    %12 = tpu.matmul %10, %11, %cst_9 {dimension_numbers = #tpu.dot_dimension_numbers<[1], [0], [0], [1], [0, 0, 1, 1], [], []>} : vector<8x64xf32>, vector<64x32xf32>, vector<8x32xf32> -> vector<8x32xf32>
    %c0_10 = arith.constant 0 : index
    %c0_11 = arith.constant 0 : index
    %13 = vector.load %arg5[%c0_10, %c0_11] : memref<1x32xf32, #tpu.memory_space<vmem>>, vector<1x32xf32>
    %14 = vector.broadcast %13 : vector<1x32xf32> to vector<8x32xf32>
    %15 = arith.addf %12, %14 : vector<8x32xf32>
    %cst_12 = arith.constant 0.000000e+00 : f32
    %16 = vector.broadcast %cst_12 : f32 to vector<8x32xf32>
    %17 = arith.cmpf ogt, %15, %16 : vector<8x32xf32>
    %cst_13 = arith.constant 2.000000e-01 : f32
    %18 = vector.broadcast %cst_13 : f32 to vector<8x32xf32>
    %19 = arith.mulf %18, %15 : vector<8x32xf32>
    %20 = arith.select %17, %15, %19 : vector<8x32xi1>, vector<8x32xf32>
    %c0_14 = arith.constant 0 : index
    %c0_15 = arith.constant 0 : index
    %21 = vector.load %arg6[%c0_14, %c0_15] : memref<32x32xf32, #tpu.memory_space<vmem>>, vector<32x32xf32>
    %cst_16 = arith.constant dense<0.000000e+00> : vector<8x32xf32>
    %22 = tpu.matmul %20, %21, %cst_16 {dimension_numbers = #tpu.dot_dimension_numbers<[1], [0], [0], [1], [0, 0, 1, 1], [], []>} : vector<8x32xf32>, vector<32x32xf32>, vector<8x32xf32> -> vector<8x32xf32>
    %c0_17 = arith.constant 0 : index
    %c0_18 = arith.constant 0 : index
    %23 = vector.load %arg7[%c0_17, %c0_18] : memref<1x32xf32, #tpu.memory_space<vmem>>, vector<1x32xf32>
    %24 = vector.broadcast %23 : vector<1x32xf32> to vector<8x32xf32>
    %25 = arith.addf %22, %24 : vector<8x32xf32>
    %cst_19 = arith.constant 0.000000e+00 : f32
    %26 = vector.broadcast %cst_19 : f32 to vector<8x32xf32>
    %27 = arith.cmpf ogt, %25, %26 : vector<8x32xf32>
    %cst_20 = arith.constant 2.000000e-01 : f32
    %28 = vector.broadcast %cst_20 : f32 to vector<8x32xf32>
    %29 = arith.mulf %28, %25 : vector<8x32xf32>
    %30 = arith.select %27, %25, %29 : vector<8x32xi1>, vector<8x32xf32>
    %c0_21 = arith.constant 0 : index
    %c0_22 = arith.constant 0 : index
    %31 = vector.load %arg8[%c0_21, %c0_22] : memref<32x64xf32, #tpu.memory_space<vmem>>, vector<32x64xf32>
    %cst_23 = arith.constant dense<0.000000e+00> : vector<8x64xf32>
    %32 = tpu.matmul %30, %31, %cst_23 {dimension_numbers = #tpu.dot_dimension_numbers<[1], [0], [0], [1], [0, 0, 1, 1], [], []>} : vector<8x32xf32>, vector<32x64xf32>, vector<8x64xf32> -> vector<8x64xf32>
    %c0_24 = arith.constant 0 : index
    %c0_25 = arith.constant 0 : index
    %33 = vector.load %arg9[%c0_24, %c0_25] : memref<1x64xf32, #tpu.memory_space<vmem>>, vector<1x64xf32>
    %34 = vector.broadcast %33 : vector<1x64xf32> to vector<8x64xf32>
    %35 = arith.addf %32, %34 : vector<8x64xf32>
    %cst_26 = arith.constant 0.000000e+00 : f32
    %36 = vector.broadcast %cst_26 : f32 to vector<8x64xf32>
    %37 = arith.cmpf ogt, %35, %36 : vector<8x64xf32>
    %cst_27 = arith.constant 2.000000e-01 : f32
    %38 = vector.broadcast %cst_27 : f32 to vector<8x64xf32>
    %39 = arith.mulf %38, %35 : vector<8x64xf32>
    %40 = arith.select %37, %35, %39 : vector<8x64xi1>, vector<8x64xf32>
    %c0_28 = arith.constant 0 : index
    %c0_29 = arith.constant 0 : index
    %41 = vector.load %arg10[%c0_28, %c0_29] : memref<64x80xf32, #tpu.memory_space<vmem>>, vector<64x80xf32>
    %cst_30 = arith.constant dense<0.000000e+00> : vector<8x80xf32>
    %42 = tpu.matmul %40, %41, %cst_30 {dimension_numbers = #tpu.dot_dimension_numbers<[1], [0], [0], [1], [0, 0, 1, 1], [], []>} : vector<8x64xf32>, vector<64x80xf32>, vector<8x80xf32> -> vector<8x80xf32>
    %c0_31 = arith.constant 0 : index
    %c0_32 = arith.constant 0 : index
    %43 = vector.load %arg11[%c0_31, %c0_32] : memref<1x80xf32, #tpu.memory_space<vmem>>, vector<1x80xf32>
    %44 = vector.broadcast %43 : vector<1x80xf32> to vector<8x80xf32>
    %45 = arith.addf %42, %44 : vector<8x80xf32>
    %c0_33 = arith.constant 0 : index
    %c0_34 = arith.constant 0 : index
    %46 = vector.load %arg12[%c0_33, %c0_34] : memref<8x80xf32, #tpu.memory_space<vmem>>, vector<8x80xf32>
    tpu.vector_store %arg12[%c0_33, %c0_34], %45 {strides = array<i32>} : memref<8x80xf32, #tpu.memory_space<vmem>>, vector<8x80xf32>,
    return
  }
  func.func @transform_0(%arg0: i32) -> (i32, i32) {
    %c0_i32 = arith.constant 0 : i32
    %c0_i32_0 = arith.constant 0 : i32
    return %arg0, %c0_i32 : i32, i32
  }
  func.func @transform_1(%arg0: i32) -> (i32, i32) {
    %c0_i32 = arith.constant 0 : i32
    %c0_i32_0 = arith.constant 0 : i32
    %c0_i32_1 = arith.constant 0 : i32
    return %c0_i32, %c0_i32_0 : i32, i32
  }
  func.func @transform_2(%arg0: i32) -> (i32, i32) {
    %c0_i32 = arith.constant 0 : i32
    %c0_i32_0 = arith.constant 0 : i32
    %c0_i32_1 = arith.constant 0 : i32
    return %c0_i32, %c0_i32_0 : i32, i32
  }
  func.func @transform_3(%arg0: i32) -> (i32, i32) {
    %c0_i32 = arith.constant 0 : i32
    %c0_i32_0 = arith.constant 0 : i32
    %c0_i32_1 = arith.constant 0 : i32
    return %c0_i32, %c0_i32_0 : i32, i32
  }
  func.func @transform_4(%arg0: i32) -> (i32, i32) {
    %c0_i32 = arith.constant 0 : i32
    %c0_i32_0 = arith.constant 0 : i32
    %c0_i32_1 = arith.constant 0 : i32
    return %c0_i32, %c0_i32_0 : i32, i32
  }
  func.func @transform_5(%arg0: i32) -> (i32, i32) {
    %c0_i32 = arith.constant 0 : i32
    %c0_i32_0 = arith.constant 0 : i32
    %c0_i32_1 = arith.constant 0 : i32
    return %c0_i32, %c0_i32_0 : i32, i32
  }
  func.func @transform_6(%arg0: i32) -> (i32, i32) {
    %c0_i32 = arith.constant 0 : i32
    %c0_i32_0 = arith.constant 0 : i32
    %c0_i32_1 = arith.constant 0 : i32
    return %c0_i32, %c0_i32_0 : i32, i32
  }
  func.func @transform_7(%arg0: i32) -> (i32, i32) {
    %c0_i32 = arith.constant 0 : i32
    %c0_i32_0 = arith.constant 0 : i32
    %c0_i32_1 = arith.constant 0 : i32
    return %c0_i32, %c0_i32_0 : i32, i32
  }
  func.func @transform_8(%arg0: i32) -> (i32, i32) {
    %c0_i32 = arith.constant 0 : i32
    %c0_i32_0 = arith.constant 0 : i32
    %c0_i32_1 = arith.constant 0 : i32
    return %c0_i32, %c0_i32_0 : i32, i32
  }
  func.func @transform_9(%arg0: i32) -> (i32, i32) {
    %c0_i32 = arith.constant 0 : i32
    %c0_i32_0 = arith.constant 0 : i32
    %c0_i32_1 = arith.constant 0 : i32
    return %c0_i32, %c0_i32_0 : i32, i32
  }
  func.func @transform_10(%arg0: i32) -> (i32, i32) {
    %c0_i32 = arith.constant 0 : i32
    %c0_i32_0 = arith.constant 0 : i32
    %c0_i32_1 = arith.constant 0 : i32
    return %c0_i32, %c0_i32_0 : i32, i32
  }
  func.func @transform_11(%arg0: i32) -> (i32, i32) {
    %c0_i32 = arith.constant 0 : i32
    %c0_i32_0 = arith.constant 0 : i32
    return %arg0, %c0_i32 : i32, i32
  }
}

</mosaic_0001>

<llo_original>
// kernel: tooth_autoencoder_forward.1
$region0: #{tooth_autoencoder_forward.1}
  #allocation0 [shape = 'u32[]', space=smem, size = 0x4, offset = 0x4, fixed_abs, tag = 'smem constant byte address 0x4 - core index']
  #allocation1 [shape = 'u32[72,128]{1,0:T(1,128)}', space=vmem, size = 0x9000, scoped, tag = 'internal scratch']
  %s0 = inlined_call_operand.vmem [shape: f32[8,80], index: 0, kind: input, shape index: {}]
  %s1 = inlined_call_operand.vmem [shape: f32[80,64], index: 1, kind: input, shape index: {}]
  %s2 = inlined_call_operand.vmem [shape: f32[1,64], index: 2, kind: input, shape index: {}]
  %s3 = inlined_call_operand.vmem [shape: f32[64,32], index: 3, kind: input, shape index: {}]
  %s4 = inlined_call_operand.vmem [shape: f32[1,32], index: 4, kind: input, shape index: {}]
  %s5 = inlined_call_operand.vmem [shape: f32[32,32], index: 5, kind: input, shape index: {}]
  %s6 = inlined_call_operand.vmem [shape: f32[1,32], index: 6, kind: input, shape index: {}]
  %s7 = inlined_call_operand.vmem [shape: f32[32,64], index: 7, kind: input, shape index: {}]
  %s8 = inlined_call_operand.vmem [shape: f32[1,64], index: 8, kind: input, shape index: {}]
  %s9 = inlined_call_operand.vmem [shape: f32[64,80], index: 9, kind: input, shape index: {}]
  %s10 = inlined_call_operand.vmem [shape: f32[1,80], index: 10, kind: input, shape index: {}]
  %s11 = inlined_call_operand.vmem [shape: f32[8,80], index: 11, kind: output, shape index: {}]
  %s12 = sld [smem:[#allocation0]]
  $region54: #{tooth_autoencoder_forward.1} parent=0
    _
  %s14 = ssub.s32 1, %s12
  %s15 = scalar_select 0, %s14, %s12
  // Predicated region
  $region2: #{tooth_autoencoder_forward.1} parent=0 // pred_check
    _
  $region3: #{tooth_autoencoder_forward.1} parent=0 // pred_check_branch
    %17 = sbr.rel (0) target = $region5
  $region4: #{tooth_autoencoder_forward.1} parent=0 // pred_region
    _
  $region5: #{tooth_autoencoder_forward.1} parent=0 // pred_fallthru
    _
  // Predicated region
  $region6: #{tooth_autoencoder_forward.1} parent=0 // pred_check
    _
  $region7: #{tooth_autoencoder_forward.1} parent=0 // pred_check_branch
    %19 = sbr.rel (0) target = $region9
  $region8: #{tooth_autoencoder_forward.1} parent=0 // pred_region
    _
  $region9: #{tooth_autoencoder_forward.1} parent=0 // pred_fallthru
    _
  // Predicated region
  $region10: #{tooth_autoencoder_forward.1} parent=0 // pred_check
    _
  $region11: #{tooth_autoencoder_forward.1} parent=0 // pred_check_branch
    %21 = sbr.rel (0) target = $region13
  $region12: #{tooth_autoencoder_forward.1} parent=0 // pred_region
    _
  $region13: #{tooth_autoencoder_forward.1} parent=0 // pred_fallthru
    _
  // Predicated region
  $region14: #{tooth_autoencoder_forward.1} parent=0 // pred_check
    _
  $region15: #{tooth_autoencoder_forward.1} parent=0 // pred_check_branch
    %23 = sbr.rel (0) target = $region17
  $region16: #{tooth_autoencoder_forward.1} parent=0 // pred_region
    _
  $region17: #{tooth_autoencoder_forward.1} parent=0 // pred_fallthru
    _
  // Predicated region
  $region18: #{tooth_autoencoder_forward.1} parent=0 // pred_check
    _
  $region19: #{tooth_autoencoder_forward.1} parent=0 // pred_check_branch
    %25 = sbr.rel (0) target = $region21
  $region20: #{tooth_autoencoder_forward.1} parent=0 // pred_region
    _
  $region21: #{tooth_autoencoder_forward.1} parent=0 // pred_fallthru
    _
  // Predicated region
  $region22: #{tooth_autoencoder_forward.1} parent=0 // pred_check
    _
  $region23: #{tooth_autoencoder_forward.1} parent=0 // pred_check_branch
    %27 = sbr.rel (0) target = $region25
  $region24: #{tooth_autoencoder_forward.1} parent=0 // pred_region
    _
  $region25: #{tooth_autoencoder_forward.1} parent=0 // pred_fallthru
    _
  // Predicated region
  $region26: #{tooth_autoencoder_forward.1} parent=0 // pred_check
    _
  $region27: #{tooth_autoencoder_forward.1} parent=0 // pred_check_branch
    %29 = sbr.rel (0) target = $region29
  $region28: #{tooth_autoencoder_forward.1} parent=0 // pred_region
    _
  $region29: #{tooth_autoencoder_forward.1} parent=0 // pred_fallthru
    _
  // Predicated region
  $region30: #{tooth_autoencoder_forward.1} parent=0 // pred_check
    _
  $region31: #{tooth_autoencoder_forward.1} parent=0 // pred_check_branch
    %31 = sbr.rel (0) target = $region33
  $region32: #{tooth_autoencoder_forward.1} parent=0 // pred_region
    _
  $region33: #{tooth_autoencoder_forward.1} parent=0 // pred_fallthru
    _
  // Predicated region
  $region34: #{tooth_autoencoder_forward.1} parent=0 // pred_check
    _
  $region35: #{tooth_autoencoder_forward.1} parent=0 // pred_check_branch
    %33 = sbr.rel (0) target = $region37
  $region36: #{tooth_autoencoder_forward.1} parent=0 // pred_region
    _
  $region37: #{tooth_autoencoder_forward.1} parent=0 // pred_fallthru
    _
  // Predicated region
  $region38: #{tooth_autoencoder_forward.1} parent=0 // pred_check
    _
  $region39: #{tooth_autoencoder_forward.1} parent=0 // pred_check_branch
    %35 = sbr.rel (0) target = $region41
  $region40: #{tooth_autoencoder_forward.1} parent=0 // pred_region
    _
  $region41: #{tooth_autoencoder_forward.1} parent=0 // pred_fallthru
    _
  // Predicated region
  $region42: #{tooth_autoencoder_forward.1} parent=0 // pred_check
    _
  $region43: #{tooth_autoencoder_forward.1} parent=0 // pred_check_branch
    %37 = sbr.rel (0) target = $region45
  $region44: #{tooth_autoencoder_forward.1} parent=0 // pred_region
    _
  $region45: #{tooth_autoencoder_forward.1} parent=0 // pred_fallthru
    _
  %v38 = vld [vmem:[%s0] sm:$0xff]
  %v39 = vld [vmem:[%s1] sm:$0xff]
  %v40 = vld [vmem:[%s1 + $0x8] sm:$0xff]
  %v41 = vld [vmem:[%s1 + $0x10] sm:$0xff]
  %v42 = vld [vmem:[%s1 + $0x18] sm:$0xff]
  %v43 = vld [vmem:[%s1 + $0x20] sm:$0xff]
  %v44 = vld [vmem:[%s1 + $0x28] sm:$0xff]
  %v45 = vld [vmem:[%s1 + $0x30] sm:$0xff]
  %v46 = vld [vmem:[%s1 + $0x38] sm:$0xff]
  %v47 = vld [vmem:[%s1 + $0x40] sm:$0xff]
  %v48 = vld [vmem:[%s1 + $0x48] sm:$0xff]
  %v49 = vld [vmem:[%s2] sm:$0x1]
  %v51 = vperm.slane %v49, 0
  %vm53 = vcmask 654336
  %v55 = vsel %vm53, %v38, 0
  %57 = vmatpush.msra.mxu0 0.0
  %58 = vmatpush.msra.mxu0 0.0
  %59 = vmatpush.msra.mxu0 0.0
  %60 = vmatpush.msra.mxu0 0.0
  %61 = vmatpush.msra.mxu0 0.0
  %62 = vmatpush.msra.mxu0 0.0
  %63 = vmatpush.msra.mxu0 %v48
  %64 = vmatpush.msra.mxu0 %v47
  %65 = vmatpush.msra.mxu0 %v46
  %66 = vmatpush.msra.mxu0 %v45
  %67 = vmatpush.msra.mxu0 %v44
  %68 = vmatpush.msra.mxu0 %v43
  %69 = vmatpush.msra.mxu0 %v42
  %70 = vmatpush.msra.mxu0 %v41
  %71 = vmatpush.msra.mxu0 %v40
  %72 = vmatpush.msra.mxu0 %v39
  %73 = vmatmul.f32.gmra.mxu0 %v55
  %v74 = vpop.f32.mrf.mxu0
  %v75 = vadd.f32 %v51, %v74
  %76 = vdwg.mxu0
  %vm77 = vcmp.gt.f32.partialorder %v75, 0.0
  %v78 = vmul.f32 %v75, 0.2
  %v79 = vsel %vm77, %v75, %v78
  %v80 = vld [vmem:[%s3] sm:$0xff]
  %v81 = vld [vmem:[%s3 + $0x8] sm:$0xff]
  %v82 = vld [vmem:[%s3 + $0x10] sm:$0xff]
  %v83 = vld [vmem:[%s3 + $0x18] sm:$0xff]
  %v84 = vld [vmem:[%s3 + $0x20] sm:$0xff]
  %v85 = vld [vmem:[%s3 + $0x28] sm:$0xff]
  %v86 = vld [vmem:[%s3 + $0x30] sm:$0xff]
  %v87 = vld [vmem:[%s3 + $0x38] sm:$0xff]
  %v88 = vld [vmem:[%s4] sm:$0x1]
  %v90 = vperm.slane %v88, 0
  %vm92 = vcmask 523264
  %v94 = vsel %vm92, %v79, 0
  %96 = vmatpush.msra.mxu0 0.0
  %97 = vmatpush.msra.mxu0 0.0
  %98 = vmatpush.msra.mxu0 0.0
  %99 = vmatpush.msra.mxu0 0.0
  %100 = vmatpush.msra.mxu0 0.0
  %101 = vmatpush.msra.mxu0 0.0
  %102 = vmatpush.msra.mxu0 0.0
  %103 = vmatpush.msra.mxu0 0.0
  %104 = vmatpush.msra.mxu0 %v87
  %105 = vmatpush.msra.mxu0 %v86
  %106 = vmatpush.msra.mxu0 %v85
  %107 = vmatpush.msra.mxu0 %v84
  %108 = vmatpush.msra.mxu0 %v83
  %109 = vmatpush.msra.mxu0 %v82
  %110 = vmatpush.msra.mxu0 %v81
  %111 = vmatpush.msra.mxu0 %v80
  %112 = vmatmul.f32.gmra.mxu0 %v94
  %v113 = vpop.f32.mrf.mxu0
  %v114 = vadd.f32 %v90, %v113
  %115 = vdwg.mxu0
  %vm116 = vcmp.gt.f32.partialorder %v114, 0.0
  %v117 = vmul.f32 %v114, 0.2
  %v118 = vsel %vm116, %v114, %v117
  %v119 = vld [vmem:[%s5] sm:$0xff]
  %v120 = vld [vmem:[%s5 + $0x8] sm:$0xff]
  %v121 = vld [vmem:[%s5 + $0x10] sm:$0xff]
  %v122 = vld [vmem:[%s5 + $0x18] sm:$0xff]
  %v123 = vld [vmem:[%s6] sm:$0x1]
  %v125 = vperm.slane %v123, 0
  %vm127 = vcmask 261120
  %v129 = vsel %vm127, %v118, 0
  %131 = vmatpush.msra.mxu0 0.0
  %132 = vmatpush.msra.mxu0 0.0
  %133 = vmatpush.msra.mxu0 0.0
  %134 = vmatpush.msra.mxu0 0.0
  %135 = vmatpush.msra.mxu0 0.0
  %136 = vmatpush.msra.mxu0 0.0
  %137 = vmatpush.msra.mxu0 0.0
  %138 = vmatpush.msra.mxu0 0.0
  %139 = vmatpush.msra.mxu0 0.0
  %140 = vmatpush.msra.mxu0 0.0
  %141 = vmatpush.msra.mxu0 0.0
  %142 = vmatpush.msra.mxu0 0.0
  %143 = vmatpush.msra.mxu0 %v122
  %144 = vmatpush.msra.mxu0 %v121
  %145 = vmatpush.msra.mxu0 %v120
  %146 = vmatpush.msra.mxu0 %v119
  %147 = vmatmul.f32.gmra.mxu0 %v129
  %v148 = vpop.f32.mrf.mxu0
  %v149 = vadd.f32 %v125, %v148
  %150 = vdwg.mxu0
  %vm151 = vcmp.gt.f32.partialorder %v149, 0.0
  %v152 = vmul.f32 %v149, 0.2
  %v153 = vsel %vm151, %v149, %v152
  %v154 = vld [vmem:[%s7] sm:$0xff]
  %v155 = vld [vmem:[%s7 + $0x8] sm:$0xff]
  %v156 = vld [vmem:[%s7 + $0x10] sm:$0xff]
  %v157 = vld [vmem:[%s7 + $0x18] sm:$0xff]
  %v158 = vld [vmem:[%s8] sm:$0x1]
  %v160 = vperm.slane %v158, 0
  %v163 = vsel %vm127, %v153, 0
  %165 = vmatpush.msra.mxu0 0.0
  %166 = vmatpush.msra.mxu0 0.0
  %167 = vmatpush.msra.mxu0 0.0
  %168 = vmatpush.msra.mxu0 0.0
  %169 = vmatpush.msra.mxu0 0.0
  %170 = vmatpush.msra.mxu0 0.0
  %171 = vmatpush.msra.mxu0 0.0
  %172 = vmatpush.msra.mxu0 0.0
  %173 = vmatpush.msra.mxu0 0.0
  %174 = vmatpush.msra.mxu0 0.0
  %175 = vmatpush.msra.mxu0 0.0
  %176 = vmatpush.msra.mxu0 0.0
  %177 = vmatpush.msra.mxu0 %v157
  %178 = vmatpush.msra.mxu0 %v156
  %179 = vmatpush.msra.mxu0 %v155
  %180 = vmatpush.msra.mxu0 %v154
  %181 = vmatmul.f32.gmra.mxu0 %v163
  %v182 = vpop.f32.mrf.mxu0
  %v183 = vadd.f32 %v160, %v182
  %184 = vdwg.mxu0
  %vm185 = vcmp.gt.f32.partialorder %v183, 0.0
  %v186 = vmul.f32 %v183, 0.2
  %v187 = vsel %vm185, %v183, %v186
  %v188 = vld [vmem:[%s9] sm:$0xff]
  %v189 = vld [vmem:[%s9 + $0x8] sm:$0xff]
  %v190 = vld [vmem:[%s9 + $0x10] sm:$0xff]
  %v191 = vld [vmem:[%s9 + $0x18] sm:$0xff]
  %v192 = vld [vmem:[%s9 + $0x20] sm:$0xff]
  %v193 = vld [vmem:[%s9 + $0x28] sm:$0xff]
  %v194 = vld [vmem:[%s9 + $0x30] sm:$0xff]
  %v195 = vld [vmem:[%s9 + $0x38] sm:$0xff]
  %v196 = vld [vmem:[%s10] sm:$0x1]
  %v198 = vperm.slane %v196, 0
  %v201 = vsel %vm92, %v187, 0
  %203 = vmatpush.msra.mxu0 0.0
  %204 = vmatpush.msra.mxu0 0.0
  %205 = vmatpush.msra.mxu0 0.0
  %206 = vmatpush.msra.mxu0 0.0
  %207 = vmatpush.msra.mxu0 0.0
  %208 = vmatpush.msra.mxu0 0.0
  %209 = vmatpush.msra.mxu0 0.0
  %210 = vmatpush.msra.mxu0 0.0
  %211 = vmatpush.msra.mxu0 %v195
  %212 = vmatpush.msra.mxu0 %v194
  %213 = vmatpush.msra.mxu0 %v193
  %214 = vmatpush.msra.mxu0 %v192
  %215 = vmatpush.msra.mxu0 %v191
  %216 = vmatpush.msra.mxu0 %v190
  %217 = vmatpush.msra.mxu0 %v189
  %218 = vmatpush.msra.mxu0 %v188
  %219 = vmatmul.f32.gmra.mxu0 %v201
  %v220 = vpop.f32.mrf.mxu0
  %v221 = vadd.f32 %v198, %v220
  %222 = vdwg.mxu0
  %223 = vst.msk [vmem:[%s11] sm:$0xff] %vm53, %v221
  // Predicated region
  $region46: #{tooth_autoencoder_forward.1} parent=0 // pred_check
    _
  $region47: #{tooth_autoencoder_forward.1} parent=0 // pred_check_branch
    %225 = sbr.rel (0) target = $region49
  $region48: #{tooth_autoencoder_forward.1} parent=0 // pred_region
    _
  $region49: #{tooth_autoencoder_forward.1} parent=0 // pred_fallthru
    _
  // Predicated region
  $region50: #{tooth_autoencoder_forward.1} parent=0 // pred_check
    _
  $region51: #{tooth_autoencoder_forward.1} parent=0 // pred_check_branch
    %227 = sbr.rel (0) target = $region53
  $region52: #{tooth_autoencoder_forward.1} parent=0 // pred_region
    _
  $region53: #{tooth_autoencoder_forward.1} parent=0 // pred_fallthru
    _

</llo_original>
